<compile_context>
chip_gen: v6e
topology: v6e:2x2x1
jax: 0.10.0
libtpu: 0.0.40
codegen_flags: <defaults>
</compile_context>

<pallas_src>
import math

import jax
import jax.numpy as jnp
from jax.experimental import pallas as pl
from jax.experimental.pallas import tpu as pltpu


def _add_pe_kernel(x_ref, pe_ref, o_ref):
    # x_ref: (bb, tr, tl) slab of bb batch rows; pe_ref: (tr, tl) PE tile
    # (resident across the innermost batch grid axis). Broadcast add; the
    # astype handles PyTorch-style promotion (e.g. bf16 x + f32 pe -> f32).
    o_ref[...] = x_ref[...].astype(o_ref.dtype) + pe_ref[...].astype(o_ref.dtype)


def make_positional_encoding(d_model, max_len=5000, dtype=jnp.float32):
    """Deterministic sinusoidal PE table, same math as the PyTorch module."""
    position = jnp.arange(0, max_len, dtype=jnp.float32)[:, None]            # (max_len, 1)
    div_term = jnp.exp(-jnp.arange(0, d_model, 2, dtype=jnp.float32)
                       * (math.log(10000.0) / d_model))                      # (ceil(D/2),)
    angles = position * div_term                                             # (max_len, ceil(D/2))
    pe = jnp.zeros((max_len, d_model), dtype=jnp.float32)
    pe = pe.at[:, 0::2].set(jnp.sin(angles))
    pe = pe.at[:, 1::2].set(jnp.cos(angles)[:, : d_model // 2])
    return pe.astype(dtype)                                                  # (max_len, d_model)


def _pick_tiles(B, R, L, itemsize, sublane, target_bytes, min_split_bytes=512 * 1024):
    """Choose (bb, tr, tl): batch-fold / row / lane tile sizes.

    Targets ~target_bytes per x block, keeps the last two block dims
    (8,128)-legal, and guarantees >=2 grid steps for non-tiny inputs so
    both v7x TensorCores get work.
    """
    # 1) Lane tile: only split the lane axis when even `sublane` rows of the
    #    full L would blow the per-block budget (very large D; bounds VMEM).
    if L % 128 == 0 and L > 128 and sublane * L * itemsize > target_bytes:
        tl = max(128, (target_bytes // (sublane * itemsize)) // 128 * 128)
        tl = min(tl, L)
    else:
        tl = L

    # 2) Row tile: sublane-aligned, or the full extent when it already fits.
    row_bytes = max(tl * itemsize, 1)
    tr_cap = max(sublane, (target_bytes // row_bytes) // sublane * sublane)
    tr = R if R <= tr_cap else tr_cap

    # 3) Batch fold: fill the remaining budget with whole batch rows so the
    #    ~0.35 us per-grid-step overhead is amortized over a bigger DMA.
    blk_bytes = max(tr * tl * itemsize, 1)
    bb = int(max(1, min(B, target_bytes // blk_bytes)))

    # 4) Guarantee >=2 grid steps for non-tiny inputs (v7x: two TensorCores).
    total_bytes = B * R * L * itemsize
    n_steps = pl.cdiv(R, tr) * pl.cdiv(L, tl) * pl.cdiv(B, bb)
    if total_bytes >= min_split_bytes and n_steps < 2:
        if bb > 1:
            bb = (bb + 1) // 2                              # split folded batches
        elif R > sublane:
            tr = min(tr, pl.cdiv(pl.cdiv(R, 2), sublane) * sublane)  # split rows
        elif L % 128 == 0 and tl > 128:
            tl = max(128, (tl // 2) // 128 * 128)           # split lanes
    return bb, tr, tl


def positional_encoding_forward(x, pe, *, donate_x=False):
    """x: (B, S, D); pe: (max_len, D). Returns x + pe[:S] broadcast over batch."""
    B, S, D = x.shape
    max_len, d_model = pe.shape
    assert d_model == D, "pe d_model mismatch"
    assert S <= max_len, "sequence length exceeds positional-encoding max_len"

    # PyTorch promotion semantics: bf16 x + f32 pe -> f32 output.
    out_dtype = jnp.result_type(x.dtype, pe.dtype)

    x_item = jnp.dtype(x.dtype).itemsize
    pe_item = jnp.dtype(pe.dtype).itemsize
    out_item = jnp.dtype(out_dtype).itemsize
    min_item = min(x_item, pe_item, out_item)
    sublane = (8 * 4) // min_item            # 8 for f32, 16 for bf16, 32 for 8-bit

    # VMEM-capacity-aware block budget & scoped-VMEM limit (v5e/v6e: 128 MiB;
    # v7x: 64 MiB). Fallback is the conservative v7x setting.
    try:
        vmem_cap = int(pltpu.get_tpu_info().vmem_capacity_bytes)
    except Exception:
        vmem_cap = 64 * 1024 * 1024
    if vmem_cap >= 96 * 1024 * 1024:
        target_bytes, vmem_limit = 4 * 1024 * 1024, 64 * 1024 * 1024
    else:
        target_bytes, vmem_limit = 2 * 1024 * 1024, 32 * 1024 * 1024

    # ---- lane-dense view selection (never fall through to <128 live lanes) ----
    pad = 0
    if D % 128 == 0:
        L, R = D, S
        x_in = x
        pe_rows_full, pe_flat = max_len, pe
    elif (S * D) % 128 == 0:
        L = 128
        R = (S * D) // 128
        x_in = x.reshape(B, R, L)                      # contiguous reshape (cheap)
        if (max_len * D) % 128 == 0:
            pe_rows_full = (max_len * D) // 128
            pe_flat = pe.reshape(pe_rows_full, L)
        else:
            pe_rows_full, pe_flat = None, None
    else:
        # Pad the model dim up to the next multiple of 128: keeps every store
        # an unmasked full-lane `vst` (biggest measured single lever).
        pad = (-D) % 128
        L = D + pad
        R = S
        x_in = jnp.pad(x, ((0, 0), (0, 0), (0, pad)))
        pe_rows_full, pe_flat = None, None

    bb, tr, tl = _pick_tiles(B, R, L, max(x_item, out_item), sublane, target_bytes)

    # PE operand: window the full table with the BlockSpec (zero extra HBM
    # copies) when every row block is full and sublane-aligned; otherwise take
    # the small [:S] slice so block row dims can equal the (sliced) extent —
    # that also keeps ragged row blocks consistent between x, pe and out.
    if pe_flat is not None and tr % sublane == 0 and R % tr == 0:
        pe_in = pe_flat
    else:
        pe_s = pe[:S]
        if pad:
            pe_s = jnp.pad(pe_s, ((0, 0), (0, pad)))
        pe_in = pe_s if pe_s.shape[-1] == L else pe_s.reshape(R, L)

    # Batch axis innermost -> the PE tile (index independent of b) stays
    # resident in VMEM across the batch loop.
    grid = (pl.cdiv(R, tr), pl.cdiv(L, tl), pl.cdiv(B, bb))

    extra = {}
    if donate_x and out_dtype == x.dtype:
        extra["input_output_aliases"] = {0: 0}

    out = pl.pallas_call(
        _add_pe_kernel,
        out_shape=jax.ShapeDtypeStruct((B, R, L), out_dtype),
        grid_spec=pltpu.PrefetchScalarGridSpec(
            num_scalar_prefetch=0,
            grid=grid,
            in_specs=[
                pl.BlockSpec((bb, tr, tl), lambda r, l, b: (b, r, l)),  # x slab
                pl.BlockSpec((tr, tl), lambda r, l, b: (r, l)),         # PE tile
            ],
            out_specs=pl.BlockSpec((bb, tr, tl), lambda r, l, b: (b, r, l)),
        ),
        compiler_params=pltpu.CompilerParams(
            # Pure elementwise: every grid point writes a distinct output
            # block, so all axes are independent (lets v7x's 2 TCs share).
            dimension_semantics=("parallel", "parallel", "parallel"),
            vmem_limit_bytes=vmem_limit,
        ),
        cost_estimate=pl.CostEstimate(
            flops=B * S * D,
            transcendentals=0,
            bytes_accessed=B * S * D * (x_item + out_item) + S * D * pe_item,
        ),
        **extra,
    )(x_in, pe_in)

    if pad:
        out = out[:, :, :D]
    elif (R, L) != (S, D):
        out = out.reshape(B, S, D)
    return out


if __name__ == "__main__":
    key = jax.random.PRNGKey(0)

    # Case 1: D not a multiple of 128 but (S*D)%128==0 -> flattened lane-dense path.
    B, S, D = 2, 8, 32
    x = jax.random.normal(key, (B, S, D), dtype=jnp.float32)
    pe = make_positional_encoding(D, max_len=64)
    out = jax.block_until_ready(positional_encoding_forward(x, pe))
    ref = x + pe[None, :S, :]
    assert out.shape == (B, S, D) and out.dtype == jnp.float32
    assert jnp.allclose(out, ref, atol=1e-6), "mismatch vs reference (case 1)"

    # Case 2: D % 128 == 0 -> full PE table windowed by the BlockSpec.
    B2, S2, D2 = 2, 16, 128
    x2 = jax.random.normal(jax.random.PRNGKey(1), (B2, S2, D2), dtype=jnp.float32)
    pe2 = make_positional_encoding(D2, max_len=32)
    out2 = jax.block_until_ready(positional_encoding_forward(x2, pe2))
    ref2 = x2 + pe2[None, :S2, :]
    assert jnp.allclose(out2, ref2, atol=1e-6), "mismatch vs reference (case 2)"

    # Case 3: bf16 activations + f32 PE -> f32 output (PyTorch promotion).
    x3 = jax.random.normal(jax.random.PRNGKey(2), (B2, S2, D2)).astype(jnp.bfloat16)
    out3 = jax.block_until_ready(positional_encoding_forward(x3, pe2))
    ref3 = x3.astype(jnp.float32) + pe2[None, :S2, :]
    assert out3.dtype == jnp.float32
    assert jnp.allclose(out3, ref3, atol=1e-2), "mismatch vs reference (case 3)"

    # Case 4: D%128 != 0 and (S*D)%128 != 0 -> padded lane-dense path.
    B4, S4, D4 = 2, 5, 24
    x4 = jax.random.normal(jax.random.PRNGKey(3), (B4, S4, D4), dtype=jnp.float32)
    pe4 = make_positional_encoding(D4, max_len=16)
    out4 = jax.block_until_ready(positional_encoding_forward(x4, pe4))
    ref4 = x4 + pe4[None, :S4, :]
    assert out4.shape == (B4, S4, D4)
    assert jnp.allclose(out4, ref4, atol=1e-6), "mismatch vs reference (case 4)"

    print("KERNEL_OK")
</pallas_src>

<mosaic_0001>
module attributes {stable_mosaic.version = 11 : i64} {
  func.func @_add_pe_kernel(%arg0: i32, %arg1: i32, %arg2: i32, %arg3: memref<2x2x128xf32, #tpu.memory_space<vmem>>, %arg4: memref<2x128xf32, #tpu.memory_space<vmem>>, %arg5: memref<2x2x128xf32, #tpu.memory_space<vmem>>) attributes {dimension_semantics = [#tpu.dimension_semantics<parallel>, #tpu.dimension_semantics<parallel>, #tpu.dimension_semantics<parallel>], iteration_bounds = array<i64: 1, 1, 1>, scalar_prefetch = 0 : i64, scratch_operands = 0 : i64, tpu.core_type = #tpu.core_type<tc>, window_params = [{transform_indices = @transform_0, window_bounds = array<i64: 2, 2, 128>}, {transform_indices = @transform_1, window_bounds = array<i64: 2, 128>}, {transform_indices = @transform_2, window_bounds = array<i64: 2, 2, 128>}]} {
    %c0 = arith.constant 0 : index
    %c0_0 = arith.constant 0 : index
    %c0_1 = arith.constant 0 : index
    %0 = vector.load %arg3[%c0, %c0_0, %c0_1] : memref<2x2x128xf32, #tpu.memory_space<vmem>>, vector<2x2x128xf32>
    %c0_2 = arith.constant 0 : index
    %c0_3 = arith.constant 0 : index
    %1 = vector.load %arg4[%c0_2, %c0_3] : memref<2x128xf32, #tpu.memory_space<vmem>>, vector<2x128xf32>
    %2 = vector.shape_cast %1 : vector<2x128xf32> to vector<1x2x128xf32>
    %3 = vector.broadcast %2 : vector<1x2x128xf32> to vector<2x2x128xf32>
    %4 = arith.addf %0, %3 : vector<2x2x128xf32>
    %c0_4 = arith.constant 0 : index
    %c0_5 = arith.constant 0 : index
    %c0_6 = arith.constant 0 : index
    %5 = vector.load %arg5[%c0_4, %c0_5, %c0_6] : memref<2x2x128xf32, #tpu.memory_space<vmem>>, vector<2x2x128xf32>
    tpu.vector_store %arg5[%c0_4, %c0_5, %c0_6], %4 {strides = array<i32>} : memref<2x2x128xf32, #tpu.memory_space<vmem>>, vector<2x2x128xf32>,
    return
  }
  func.func @transform_0(%arg0: i32, %arg1: i32, %arg2: i32) -> (i32, i32, i32) {
    %c0_i32 = arith.constant 0 : i32
    return %arg2, %arg0, %arg1 : i32, i32, i32
  }
  func.func @transform_1(%arg0: i32, %arg1: i32, %arg2: i32) -> (i32, i32) {
    %c0_i32 = arith.constant 0 : i32
    return %arg0, %arg1 : i32, i32
  }
  func.func @transform_2(%arg0: i32, %arg1: i32, %arg2: i32) -> (i32, i32, i32) {
    %c0_i32 = arith.constant 0 : i32
    return %arg2, %arg0, %arg1 : i32, i32, i32
  }
}

</mosaic_0001>

<llo_original>
// kernel: tpu_custom_call.1
$region0: #{tpu_custom_call.1}
  #allocation0 [shape = 'u32[]', space=smem, size = 0x4, offset = 0x4, fixed_abs, tag = 'smem constant byte address 0x4 - core index']
  #allocation1 [shape = 'u32[144,128]{1,0:T(1,128)}', space=vmem, size = 0x12000, scoped, tag = 'internal scratch']
  %s0 = inlined_call_operand.hbm [shape: f32[2,2,128], index: 0, kind: input, shape index: {}]
  %s1 = inlined_call_operand.hbm [shape: f32[2,128], index: 1, kind: input, shape index: {}]
  %s2 = inlined_call_operand.hbm [shape: f32[2,2,128], index: 2, kind: output, shape index: {}]
  %s3 = sld [smem:[#allocation0]]
  $region26: #{tpu_custom_call.1} parent=0
    _
  %s5 = ssub.s32 1, %s3
  %s6 = scalar_select 0, %s5, %s3
  $region1: #{tpu_custom_call.1} parent=0
    #allocation2 [shape = 'u8[2048]{0}', space=vmem, size = 0x800, scoped, tag = 'input window, operand 0, single buffered']
    #allocation3 [shape = 's32[1]{0}', space=sflag, size = 0x4, scoped, tag = 'scoped memory for tpu_custom_call.1']
    #allocation4 [shape = 's32[1]{0}', space=sflag, size = 0x4, scoped, tag = 'scoped memory for tpu_custom_call.1']
    #allocation5 [shape = 'u8[1024]{0}', space=vmem, size = 0x400, scoped, tag = 'input window, operand 1, single buffered']
    #allocation6 [shape = 's32[1]{0}', space=sflag, size = 0x4, scoped, tag = 'scoped memory for tpu_custom_call.1']
    #allocation7 [shape = 'u8[2048]{0}', space=vmem, size = 0x800, scoped, tag = 'output window, operand 0, single buffered']
    %7 = vsyncpa [#allocation3], 0
    %8 = vsyncpa [#allocation6], 0
    %9 = vsyncpa [#allocation4], 0
    // Predicated region
    $region2: #{tpu_custom_call.1} parent=1 // pred_check
      _
    $region3: #{tpu_custom_call.1} parent=1 // pred_check_branch
      %11 = sbr.rel (0) target = $region5
    $region4: #{tpu_custom_call.1} parent=1 // pred_region
      %s13 = ssub.s32 64, 64
      %14 = vsyncadd [#allocation3], %s13
      %s15 = sshll.u32 [#allocation2], 4
      %s16 = int_to_ptr.vmem [resolvable:$true] %s15
      %21 = dma.hbm_to_vmem [thread:$0]  %s0, 64, %s16, [#allocation3], 32, 32, 2
    $region5: #{tpu_custom_call.1} parent=1 // pred_fallthru
      _
    // Predicated region
    $region6: #{tpu_custom_call.1} parent=1 // pred_check
      _
    $region7: #{tpu_custom_call.1} parent=1 // pred_check_branch
      %23 = sbr.rel (0) target = $region9
    $region8: #{tpu_custom_call.1} parent=1 // pred_region
      %s25 = ssub.s32 32, 32
      %26 = vsyncadd [#allocation6], %s25
      %s28 = sshll.u32 [#allocation5], 4
      %s29 = int_to_ptr.vmem [resolvable:$true] %s28
      %31 = dma.hbm_to_vmem [thread:$0]  %s1, 32, %s29, [#allocation6]
    $region9: #{tpu_custom_call.1} parent=1 // pred_fallthru
      _
    // Predicated region
    $region10: #{tpu_custom_call.1} parent=1 // pred_check
      _
    $region11: #{tpu_custom_call.1} parent=1 // pred_check_branch
      %33 = sbr.rel (0) target = $region13
    $region12: #{tpu_custom_call.1} parent=1 // pred_region
      %34 = dma.done [#allocation3], 64
    $region13: #{tpu_custom_call.1} parent=1 // pred_fallthru
      _
    // Predicated region
    $region14: #{tpu_custom_call.1} parent=1 // pred_check
      _
    $region15: #{tpu_custom_call.1} parent=1 // pred_check_branch
      %36 = sbr.rel (0) target = $region17
    $region16: #{tpu_custom_call.1} parent=1 // pred_region
      %37 = dma.done [#allocation6], 32
    $region17: #{tpu_custom_call.1} parent=1 // pred_fallthru
      _
    %v38 = vld [vmem:[#allocation2] sm:$0x3]
    %v39 = vld [vmem:[#allocation2 + $0x2] sm:$0x3]
    %v40 = vld [vmem:[#allocation5] sm:$0x3]
    %v41 = vadd.f32 %v38, %v40
    %v42 = vadd.f32 %v39, %v40
    %43 = vst [vmem:[#allocation7] sm:$0x3] %v41
    %44 = vst [vmem:[#allocation7 + $0x2] sm:$0x3] %v42
    // Predicated region
    $region18: #{tpu_custom_call.1} parent=1 // pred_check
      _
    $region19: #{tpu_custom_call.1} parent=1 // pred_check_branch
      %46 = sbr.rel (0) target = $region21
    $region20: #{tpu_custom_call.1} parent=1 // pred_region
      %s48 = ssub.s32 64, 64
      %49 = vsyncadd [#allocation4], %s48
      %s50 = sshll.u32 [#allocation7], 4
      %s51 = int_to_ptr.vmem [resolvable:$true] %s50
      %56 = dma.vmem_to_hbm [thread:$0]  %s51, 64, %s2, [#allocation4], 32, 32, 2
    $region21: #{tpu_custom_call.1} parent=1 // pred_fallthru
      _
    // Predicated region
    $region22: #{tpu_custom_call.1} parent=1 // pred_check
      _
    $region23: #{tpu_custom_call.1} parent=1 // pred_check_branch
      %58 = sbr.rel (0) target = $region25
    $region24: #{tpu_custom_call.1} parent=1 // pred_region
      %59 = dma.done [#allocation4], 64
    $region25: #{tpu_custom_call.1} parent=1 // pred_fallthru
      _
    %60 = vsyncpa [#allocation3], 1
    %61 = vsyncpa [#allocation6], 1
    %62 = vsyncpa [#allocation4], 1

</llo_original>
